<compile_context>
chip_gen: v5e
topology: v5e:2x2
jax: 0.10.0
libtpu: 0.0.40
codegen_flags: <defaults>
</compile_context>

<pallas_src>
from functools import partial

import jax
import jax.numpy as jnp
from jax.experimental import pallas as pl
from jax.experimental.pallas import tpu as pltpu


# ----------------------------- Pallas kernel -------------------------------- #
def _critic_attention_kernel(enc_ref, bias_ref, we_ref, v_ref, out_ref, *, n_nodes):
    """One grid step processes Bt = Lt // n_nodes batch elements, laid out on lanes.

    enc_ref : (H, Lt)  encoder states for this tile; lanes are (batch-major, node-minor)
    bias_ref: (H, B)   Wd @ decoder_hidden^T for the whole batch (tiny, resident)
    we_ref  : (H, H)   encoder half of W (resident)
    v_ref   : (H, 1)   attention vector as a column (resident, f32)
    out_ref : (1, Lt)  softmax attention weights, lane-dense store
    """
    _, Lt = enc_ref.shape
    B = bias_ref.shape[1]
    Bt = Lt // n_nodes
    i = pl.program_id(0)

    # ---- main MXU matmul: We @ enc over >=128 lanes, f32 accumulation -------------
    u = jnp.dot(we_ref[...], enc_ref[...],
                preferred_element_type=jnp.float32)                       # (H, Lt)

    # ---- hoisted decoder bias, broadcast over each batch's n_nodes lanes ----------
    # one-hot "lane -> batch" selector built from iota (no HBM traffic, no division)
    g = jax.lax.broadcasted_iota(jnp.int32, (B, Lt), 1) + i * Lt          # global lane id
    b = jax.lax.broadcasted_iota(jnp.int32, (B, Lt), 0)                   # batch id
    sel = ((g >= b * n_nodes) & (g < (b + 1) * n_nodes)).astype(jnp.float32)
    bias = jnp.dot(bias_ref[...], sel,
                   preferred_element_type=jnp.float32)                    # (H, Lt)

    t = jnp.tanh(u + bias)                                                # EUP, f32

    # ---- v projection on VPU + sublane reduce (no M=1 MXU pass) -------------------
    logit = jnp.sum(t * v_ref[...], axis=0, keepdims=True)                # (1, Lt)

    # ---- segmented, numerically-stable softmax over each batch's n_nodes lanes ----
    ll = jax.lax.broadcasted_iota(jnp.int32, (Bt, Lt), 1)                 # local lane id
    lr = jax.lax.broadcasted_iota(jnp.int32, (Bt, Lt), 0)                 # local batch row
    seg = (ll >= lr * n_nodes) & (ll < (lr + 1) * n_nodes)                # (Bt, Lt) one-hot rows
    segf = seg.astype(jnp.float32)

    masked = jnp.where(seg, logit, -jnp.inf)                              # (Bt, Lt)
    seg_max = jnp.max(masked, axis=-1, keepdims=True)                     # (Bt, 1)
    m = jnp.sum(segf * seg_max, axis=0, keepdims=True)                    # (1, Lt) per-lane max
    e = jnp.exp(logit - m)                                                # (1, Lt)
    seg_sum = jnp.sum(segf * e, axis=-1, keepdims=True)                   # (Bt, 1)
    denom = jnp.sum(segf * seg_sum, axis=0, keepdims=True)                # (1, Lt)

    inv = pl.reciprocal(denom, approx=True)                               # EUP slot
    inv = inv * (2.0 - denom * inv)                                       # 1 Newton step -> f32 accuracy
    out_ref[...] = (e * inv).astype(out_ref.dtype)


def _pick_batch_tile(B, N):
    """Batch-tile size Bt: lane-dense (Bt*N % 128 == 0) tiles, prefer >=2 grid steps
    (v7x has 2 TensorCores) and a moderate (<=512) lane extent per step."""
    cands = [bt for bt in range(1, B + 1) if B % bt == 0 and (bt * N) % 128 == 0]
    if not cands:
        return B            # single full-batch step; block == full dims is always legal
    multi = [bt for bt in cands if B // bt >= 2]
    pool = multi if multi else cands
    capped = [bt for bt in pool if bt * N <= 512]
    return max(capped) if capped else min(pool)


@jax.jit
def critic_attention(We, Wd, v_col, encoder_hidden, decoder_hidden):
    """encoder_hidden: (B, H, N); decoder_hidden: (B, H); We/Wd: (H, H); v_col: (H, 1).

    Returns attention weights of shape (B, 1, N) in encoder_hidden.dtype.
    """
    B, H, N = encoder_hidden.shape
    dtype = encoder_hidden.dtype
    Bt = _pick_batch_tile(B, N)
    Lt = Bt * N
    grid = (B // Bt,)

    # Present enc with (batch, node) folded onto the lane axis (lane-dense MXU tiles),
    # in the caller's dtype - no forced f32 upcast of the big activation tensor.
    enc2d = jnp.transpose(encoder_hidden, (1, 0, 2)).reshape(H, B * N)
    # Hoist the decoder contribution: one (H,H)x(H,B) matmul for the whole batch.
    bias_hb = jnp.einsum('hk,bk->hb', Wd, decoder_hidden,
                         preferred_element_type=jnp.float32)               # (H, B) f32
    we = We.astype(dtype)                 # weights match the streamed activation dtype
    v_c = v_col.astype(jnp.float32)       # tiny; kept f32 for the VPU projection

    kernel = partial(_critic_attention_kernel, n_nodes=N)

    out_flat = pl.pallas_call(
        kernel,
        out_shape=jax.ShapeDtypeStruct((1, B * N), dtype),
        grid_spec=pltpu.PrefetchScalarGridSpec(
            num_scalar_prefetch=0,
            grid=grid,
            in_specs=[
                pl.BlockSpec((H, Lt), lambda i: (0, i)),    # enc tile: Bt batches on lanes
                pl.BlockSpec((H, B), lambda i: (0, 0)),     # bias: whole batch, resident
                pl.BlockSpec((H, H), lambda i: (0, 0)),     # We: resident
                pl.BlockSpec((H, 1), lambda i: (0, 0)),     # v : resident
            ],
            out_specs=pl.BlockSpec((1, Lt), lambda i: (0, i)),  # lane-dense output blocks
        ),
        compiler_params=pltpu.CompilerParams(
            dimension_semantics=("parallel",)),             # independent batch tiles
    )(enc2d, bias_hb, we, v_c)

    return out_flat.reshape(B, 1, N)


# ----------------------------- Module wrapper -------------------------------- #
class CriticAttentionPallas:
    """JAX/Pallas port of the PyTorch criticAttention forward pass."""

    def __init__(self, hidden_size, key=None):
        self.hidden_size = hidden_size
        if key is None:
            # NOTE: the PyTorch module initializes v and W to zeros (they are trained).
            self.v = jnp.zeros((1, 1, hidden_size), jnp.float32)
            self.W = jnp.zeros((1, hidden_size, 2 * hidden_size), jnp.float32)
        else:
            # Random init so the correctness check exercises real math.
            kv, kw = jax.random.split(key)
            self.v = 0.1 * jax.random.normal(kv, (1, 1, hidden_size), jnp.float32)
            self.W = 0.1 * jax.random.normal(kw, (1, hidden_size, 2 * hidden_size), jnp.float32)
        # Pre-split the parameters once at init (no per-call eager slicing/casting).
        self.We = self.W[0, :, :hidden_size]          # (H, H)
        self.Wd = self.W[0, :, hidden_size:]          # (H, H)
        self.v_col = self.v.reshape(hidden_size, 1)   # (H, 1)

    def __call__(self, encoder_hidden, decoder_hidden):
        return critic_attention(self.We, self.Wd, self.v_col,
                                encoder_hidden, decoder_hidden)


# ----------------------------- plain-JAX reference --------------------------- #
def _ref_forward(v, W, encoder_hidden, decoder_hidden):
    B, H, N = encoder_hidden.shape
    hidden = jnp.broadcast_to(decoder_hidden[:, :, None], (B, H, N))
    hidden = jnp.concatenate([encoder_hidden, hidden], axis=1)            # (B, 2H, N)
    Wb = jnp.broadcast_to(W, (B, H, 2 * H))
    vb = jnp.broadcast_to(v, (B, 1, H))
    pre = jnp.einsum('bhk,bkn->bhn', Wb, hidden)                          # (B, H, N)
    logit = jnp.einsum('bih,bhn->bin', vb, jnp.tanh(pre))                 # (B, 1, N)
    return jax.nn.softmax(logit, axis=2)


# ----------------------------------- main ------------------------------------ #
if __name__ == "__main__":
    key = jax.random.PRNGKey(0)
    k_enc, k_dec, k_params = jax.random.split(key, 3)

    # Small shapes; batch=16, nodes=16 -> two lane-dense 128-lane tiles (grid=(2,)).
    B, hidden_size, N = 16, 32, 16

    attn = CriticAttentionPallas(hidden_size, key=k_params)

    encoder_hidden = jax.random.normal(k_enc, (B, hidden_size, N), jnp.float32)
    decoder_hidden = jax.random.normal(k_dec, (B, hidden_size), jnp.float32)

    out = jax.block_until_ready(attn(encoder_hidden, decoder_hidden))
    assert out.shape == (B, 1, N), out.shape

    ref = jax.block_until_ready(_ref_forward(attn.v, attn.W, encoder_hidden, decoder_hidden))
    err = float(jnp.max(jnp.abs(out - ref)))
    assert jnp.allclose(out, ref, atol=1e-4, rtol=1e-4), err
    # rows sum to 1
    assert jnp.allclose(jnp.sum(out, axis=2), jnp.ones((B, 1)), atol=1e-4)

    # bf16 inputs take the same kernel (halved HBM traffic, native MXU path).
    out_bf16 = attn(encoder_hidden.astype(jnp.bfloat16), decoder_hidden.astype(jnp.bfloat16))
    out_bf16 = jax.block_until_ready(out_bf16)
    assert out_bf16.dtype == jnp.bfloat16
    assert jnp.allclose(out_bf16.astype(jnp.float32), ref, atol=3e-2)

    print("KERNEL_OK")
</pallas_src>

<mosaic_0001>
module attributes {stable_mosaic.version = 11 : i64} {
  func.func @_critic_attention_kernel(%arg0: i32, %arg1: memref<32x128xf32, #tpu.memory_space<vmem>>, %arg2: memref<32x16xf32, #tpu.memory_space<vmem>>, %arg3: memref<32x32xf32, #tpu.memory_space<vmem>>, %arg4: memref<32x1xf32, #tpu.memory_space<vmem>>, %arg5: memref<1x128xf32, #tpu.memory_space<vmem>>) attributes {dimension_semantics = [#tpu.dimension_semantics<parallel>], iteration_bounds = array<i64: 2>, scalar_prefetch = 0 : i64, scratch_operands = 0 : i64, tpu.core_type = #tpu.core_type<tc>, window_params = [{transform_indices = @transform_0, window_bounds = array<i64: 32, 128>}, {pipeline_mode = #tpu.pipeline_mode<synchronous>, transform_indices = @transform_1, window_bounds = array<i64: 32, 16>}, {pipeline_mode = #tpu.pipeline_mode<synchronous>, transform_indices = @transform_2, window_bounds = array<i64: 32, 32>}, {pipeline_mode = #tpu.pipeline_mode<synchronous>, transform_indices = @transform_3, window_bounds = array<i64: 32, 1>}, {transform_indices = @transform_4, window_bounds = array<i64: 1, 128>}]} {
    %c0 = arith.constant 0 : index
    %c0_0 = arith.constant 0 : index
    %0 = vector.load %arg3[%c0, %c0_0] : memref<32x32xf32, #tpu.memory_space<vmem>>, vector<32x32xf32>
    %c0_1 = arith.constant 0 : index
    %c0_2 = arith.constant 0 : index
    %1 = vector.load %arg1[%c0_1, %c0_2] : memref<32x128xf32, #tpu.memory_space<vmem>>, vector<32x128xf32>
    %cst = arith.constant dense<0.000000e+00> : vector<32x128xf32>
    %2 = tpu.matmul %0, %1, %cst {dimension_numbers = #tpu.dot_dimension_numbers<[1], [0], [0], [1], [0, 0, 1, 1], [], []>} : vector<32x32xf32>, vector<32x128xf32>, vector<32x128xf32> -> vector<32x128xf32>
    %3 = tpu.iota {dimensions = array<i32: 1>} : vector<16x128xi32>
    %c128_i32 = arith.constant 128 : i32
    %4 = arith.muli %arg0, %c128_i32 : i32
    %5 = vector.broadcast %4 : i32 to vector<16x128xi32>
    %6 = arith.addi %3, %5 : vector<16x128xi32>
    %7 = tpu.iota {dimensions = array<i32: 0>} : vector<16x128xi32>
    %c16_i32 = arith.constant 16 : i32
    %8 = vector.broadcast %c16_i32 : i32 to vector<16x128xi32>
    %9 = arith.muli %7, %8 : vector<16x128xi32>
    %10 = arith.cmpi sge, %6, %9 : vector<16x128xi32>
    %c1_i32 = arith.constant 1 : i32
    %11 = vector.broadcast %c1_i32 : i32 to vector<16x128xi32>
    %12 = arith.addi %7, %11 : vector<16x128xi32>
    %c16_i32_3 = arith.constant 16 : i32
    %13 = vector.broadcast %c16_i32_3 : i32 to vector<16x128xi32>
    %14 = arith.muli %12, %13 : vector<16x128xi32>
    %15 = arith.cmpi slt, %6, %14 : vector<16x128xi32>
    %16 = arith.andi %10, %15 : vector<16x128xi1>
    %17 = arith.extui %16 : vector<16x128xi1> to vector<16x128xi32>
    %18 = arith.sitofp %17 : vector<16x128xi32> to vector<16x128xf32>
    %c0_4 = arith.constant 0 : index
    %c0_5 = arith.constant 0 : index
    %19 = vector.load %arg2[%c0_4, %c0_5] : memref<32x16xf32, #tpu.memory_space<vmem>>, vector<32x16xf32>
    %cst_6 = arith.constant dense<0.000000e+00> : vector<32x128xf32>
    %20 = tpu.matmul %19, %18, %cst_6 {dimension_numbers = #tpu.dot_dimension_numbers<[1], [0], [0], [1], [0, 0, 1, 1], [], []>} : vector<32x16xf32>, vector<16x128xf32>, vector<32x128xf32> -> vector<32x128xf32>
    %21 = arith.addf %2, %20 : vector<32x128xf32>
    %22 = math.tanh %21 : vector<32x128xf32>
    %c0_7 = arith.constant 0 : index
    %c0_8 = arith.constant 0 : index
    %23 = vector.load %arg4[%c0_7, %c0_8] : memref<32x1xf32, #tpu.memory_space<vmem>>, vector<32x1xf32>
    %24 = vector.broadcast %23 : vector<32x1xf32> to vector<32x128xf32>
    %25 = arith.mulf %22, %24 : vector<32x128xf32>
    %cst_9 = arith.constant dense<0.000000e+00> : vector<128xf32>
    %26 = vector.multi_reduction <add>, %25, %cst_9 [0] : vector<32x128xf32> to vector<128xf32>
    %27 = vector.shape_cast %26 : vector<128xf32> to vector<1x128xf32>
    %28 = tpu.iota {dimensions = array<i32: 1>} : vector<8x128xi32>
    %29 = tpu.iota {dimensions = array<i32: 0>} : vector<8x128xi32>
    %c16_i32_10 = arith.constant 16 : i32
    %30 = vector.broadcast %c16_i32_10 : i32 to vector<8x128xi32>
    %31 = arith.muli %29, %30 : vector<8x128xi32>
    %32 = arith.cmpi sge, %28, %31 : vector<8x128xi32>
    %c1_i32_11 = arith.constant 1 : i32
    %33 = vector.broadcast %c1_i32_11 : i32 to vector<8x128xi32>
    %34 = arith.addi %29, %33 : vector<8x128xi32>
    %c16_i32_12 = arith.constant 16 : i32
    %35 = vector.broadcast %c16_i32_12 : i32 to vector<8x128xi32>
    %36 = arith.muli %34, %35 : vector<8x128xi32>
    %37 = arith.cmpi slt, %28, %36 : vector<8x128xi32>
    %38 = arith.andi %32, %37 : vector<8x128xi1>
    %39 = arith.extui %38 : vector<8x128xi1> to vector<8x128xi32>
    %40 = arith.sitofp %39 : vector<8x128xi32> to vector<8x128xf32>
    %cst_13 = arith.constant 0xFF800000 : f32
    %41 = vector.shape_cast %27 : vector<1x128xf32> to vector<1x128xf32>
    %42 = vector.broadcast %41 : vector<1x128xf32> to vector<8x128xf32>
    %43 = vector.broadcast %cst_13 : f32 to vector<8x128xf32>
    %44 = arith.select %38, %42, %43 : vector<8x128xi1>, vector<8x128xf32>
    %cst_14 = arith.constant dense<0xFF800000> : vector<8xf32>
    %45 = vector.multi_reduction <maximumf>, %44, %cst_14 [1] : vector<8x128xf32> to vector<8xf32>
    %46 = vector.shape_cast %45 : vector<8xf32> to vector<8x1xf32>
    %47 = vector.broadcast %46 : vector<8x1xf32> to vector<8x128xf32>
    %48 = arith.mulf %40, %47 : vector<8x128xf32>
    %cst_15 = arith.constant dense<0.000000e+00> : vector<128xf32>
    %49 = vector.multi_reduction <add>, %48, %cst_15 [0] : vector<8x128xf32> to vector<128xf32>
    %50 = vector.shape_cast %49 : vector<128xf32> to vector<1x128xf32>
    %51 = arith.subf %27, %50 : vector<1x128xf32>
    %52 = math.exp %51 : vector<1x128xf32>
    %53 = vector.broadcast %52 : vector<1x128xf32> to vector<8x128xf32>
    %54 = arith.mulf %40, %53 : vector<8x128xf32>
    %cst_16 = arith.constant dense<0.000000e+00> : vector<8xf32>
    %55 = vector.multi_reduction <add>, %54, %cst_16 [1] : vector<8x128xf32> to vector<8xf32>
    %56 = vector.shape_cast %55 : vector<8xf32> to vector<8x1xf32>
    %57 = vector.broadcast %56 : vector<8x1xf32> to vector<8x128xf32>
    %58 = arith.mulf %40, %57 : vector<8x128xf32>
    %cst_17 = arith.constant dense<0.000000e+00> : vector<128xf32>
    %59 = vector.multi_reduction <add>, %58, %cst_17 [0] : vector<8x128xf32> to vector<128xf32>
    %60 = vector.shape_cast %59 : vector<128xf32> to vector<1x128xf32>
    %61 = tpu.reciprocal %60 {approx = true} : vector<1x128xf32> -> vector<1x128xf32>
    %62 = arith.mulf %60, %61 : vector<1x128xf32>
    %cst_18 = arith.constant 2.000000e+00 : f32
    %63 = vector.broadcast %cst_18 : f32 to vector<1x128xf32>
    %64 = arith.subf %63, %62 : vector<1x128xf32>
    %65 = arith.mulf %61, %64 : vector<1x128xf32>
    %66 = arith.mulf %52, %65 : vector<1x128xf32>
    %c0_19 = arith.constant 0 : index
    %c0_20 = arith.constant 0 : index
    %67 = vector.load %arg5[%c0_19, %c0_20] : memref<1x128xf32, #tpu.memory_space<vmem>>, vector<1x128xf32>
    tpu.vector_store %arg5[%c0_19, %c0_20], %66 {strides = array<i32>} : memref<1x128xf32, #tpu.memory_space<vmem>>, vector<1x128xf32>,
    return
  }
  func.func @transform_0(%arg0: i32) -> (i32, i32) {
    %c0_i32 = arith.constant 0 : i32
    %c0_i32_0 = arith.constant 0 : i32
    return %c0_i32, %arg0 : i32, i32
  }
  func.func @transform_1(%arg0: i32) -> (i32, i32) {
    %c0_i32 = arith.constant 0 : i32
    %c0_i32_0 = arith.constant 0 : i32
    %c0_i32_1 = arith.constant 0 : i32
    return %c0_i32, %c0_i32_0 : i32, i32
  }
  func.func @transform_2(%arg0: i32) -> (i32, i32) {
    %c0_i32 = arith.constant 0 : i32
    %c0_i32_0 = arith.constant 0 : i32
    %c0_i32_1 = arith.constant 0 : i32
    return %c0_i32, %c0_i32_0 : i32, i32
  }
  func.func @transform_3(%arg0: i32) -> (i32, i32) {
    %c0_i32 = arith.constant 0 : i32
    %c0_i32_0 = arith.constant 0 : i32
    %c0_i32_1 = arith.constant 0 : i32
    return %c0_i32, %c0_i32_0 : i32, i32
  }
  func.func @transform_4(%arg0: i32) -> (i32, i32) {
    %c0_i32 = arith.constant 0 : i32
    %c0_i32_0 = arith.constant 0 : i32
    return %c0_i32, %arg0 : i32, i32
  }
}

</mosaic_0001>

<llo_original>
// kernel: critic_attention.1
$region0: #{critic_attention.1}
  #allocation0 [shape = 'u32[]', space=smem, size = 0x4, offset = 0x4, fixed_abs, tag = 'smem constant byte address 0x4 - core index']
  #allocation1 [shape = 'u32[72,128]{1,0:T(1,128)}', space=vmem, size = 0x9000, scoped, tag = 'internal scratch']
  %s0 = inlined_call_operand.vmem [shape: f32[32,256], index: 0, kind: input, shape index: {}]
  %s1 = inlined_call_operand.vmem [shape: f32[32,16], index: 1, kind: input, shape index: {}]
  %s2 = inlined_call_operand.vmem [shape: f32[32,32], index: 2, kind: input, shape index: {}]
  %s3 = inlined_call_operand.vmem [shape: f32[32,1], index: 3, kind: input, shape index: {}]
  %s4 = inlined_call_operand.vmem [shape: f32[1,256], index: 4, kind: output, shape index: {}]
  %s5 = sld [smem:[#allocation0]]
  $region87: #{critic_attention.1} parent=0
    _
  %s7 = ssub.s32 1, %s5
  %s8 = scalar_select 0, %s7, %s5
  $region1: #{critic_attention.1} parent=0
    #allocation2 [shape = 'u8[32768]{0}', space=vmem, size = 0x8000, scoped, tag = 'input window, operand 0']
    loop: start=0, step=1, limit=4
    $region2: #{critic_attention.1} parent=1 // loop_pre_header
      _
    $region3: #{critic_attention.1} parent=1 // loop_header
      %s10 = sphi 0, %s14
      %p11 = scmp.ge.s32.totalorder %s10, 4
      %s20 = sphi 0, %s22
      %s23 = sphi 0, %s20
      %s24 = sphi 0, %s23
      %s40 = sphi 0, %s24
      %s44 = sphi 0, %s44
      %s46 = sphi 0, %s44
      %s47 = sphi 0, %s46
      %s61 = sphi 0, %s47
      %s65 = sphi 0, %s65
      %s67 = sphi 0, %s65
      %s68 = sphi 0, %s67
      %s82 = sphi 0, %s68
      %s86 = sphi 0, %s86
      %s88 = sphi 0, %s86
      %s89 = sphi 0, %s88
      %s103 = sphi 0, %s89
      %s109 = sphi 0, %s111
      %s112 = sphi 0, %s109
      %s113 = sphi 0, %s112
      %s129 = sphi 0, %s113
    $region4: #{critic_attention.1} parent=1 // loop_header_branch
      %13 = sbr.rel (%p11) target = $region8
    $region5: #{critic_attention.1} parent=1 // loop_body
      %s15 = ssub.s32 %s10, 1
      %s16 = ssub.s32 %s10, 2
      %s17 = sadd.s32 %s10, 1
      %s18 = ssub.s32 %s10, %s17
      %p19 = scmp.eq.s32.totalorder %s18, 0
      %s21 = sadd.s32 %s20, 1
      %s22 = scalar_select %p19, %s20, %s21
      %p25 = pneg %p19
      %p26 = scmp.eq.s32.totalorder %s10, 1
      %p27 = por %p25, %p26
      %p28 = scmp.ne.s32.totalorder %s20, %s23
      %p29 = scmp.eq.s32.totalorder %s10, 0
      %p30 = por %p28, %p29
      %p31 = scmp.ne.s32.totalorder %s20, %s23
      %p32 = scmp.eq.s32.totalorder %s15, 1
      %p33 = por %p31, %p32
      %p34 = scmp.ne.s32.totalorder %s23, %s24
      %p35 = scmp.eq.s32.totalorder %s15, 0
      %p36 = por %p34, %p35
      %p37 = scmp.ne.s32.totalorder %s23, %s24
      %p38 = scmp.eq.s32.totalorder %s16, 1
      %p39 = por %p37, %p38
      %p41 = scmp.ne.s32.totalorder %s24, %s40
      %p42 = scmp.eq.s32.totalorder %s16, 0
      %p43 = por %p41, %p42
      %s45 = sadd.s32 %s44, 1
      %p48 = scmp.eq.s32.totalorder %s10, 1
      %p49 = scmp.ne.s32.totalorder %s44, %s46
      %p50 = scmp.eq.s32.totalorder %s10, 0
      %p51 = por %p49, %p50
      %p52 = scmp.ne.s32.totalorder %s44, %s46
      %p53 = scmp.eq.s32.totalorder %s15, 1
      %p54 = por %p52, %p53
      %p55 = scmp.ne.s32.totalorder %s46, %s47
      %p56 = scmp.eq.s32.totalorder %s15, 0
      %p57 = por %p55, %p56
      %p58 = scmp.ne.s32.totalorder %s46, %s47
      %p59 = scmp.eq.s32.totalorder %s16, 1
      %p60 = por %p58, %p59
      %p62 = scmp.ne.s32.totalorder %s47, %s61
      %p63 = scmp.eq.s32.totalorder %s16, 0
      %p64 = por %p62, %p63
      %s66 = sadd.s32 %s65, 1
      %p69 = scmp.eq.s32.totalorder %s10, 1
      %p70 = scmp.ne.s32.totalorder %s65, %s67
      %p71 = scmp.eq.s32.totalorder %s10, 0
      %p72 = por %p70, %p71
      %p73 = scmp.ne.s32.totalorder %s65, %s67
      %p74 = scmp.eq.s32.totalorder %s15, 1
      %p75 = por %p73, %p74
      %p76 = scmp.ne.s32.totalorder %s67, %s68
      %p77 = scmp.eq.s32.totalorder %s15, 0
      %p78 = por %p76, %p77
      %p79 = scmp.ne.s32.totalorder %s67, %s68
      %p80 = scmp.eq.s32.totalorder %s16, 1
      %p81 = por %p79, %p80
      %p83 = scmp.ne.s32.totalorder %s68, %s82
      %p84 = scmp.eq.s32.totalorder %s16, 0
      %p85 = por %p83, %p84
      %s87 = sadd.s32 %s86, 1
      %p90 = scmp.eq.s32.totalorder %s10, 1
      %p91 = scmp.ne.s32.totalorder %s86, %s88
      %p92 = scmp.eq.s32.totalorder %s10, 0
      %p93 = por %p91, %p92
      %p94 = scmp.ne.s32.totalorder %s86, %s88
      %p95 = scmp.eq.s32.totalorder %s15, 1
      %p96 = por %p94, %p95
      %p97 = scmp.ne.s32.totalorder %s88, %s89
      %p98 = scmp.eq.s32.totalorder %s15, 0
      %p99 = por %p97, %p98
      %p100 = scmp.ne.s32.totalorder %s88, %s89
      %p101 = scmp.eq.s32.totalorder %s16, 1
      %p102 = por %p100, %p101
      %p104 = scmp.ne.s32.totalorder %s89, %s103
      %p105 = scmp.eq.s32.totalorder %s16, 0
      %p106 = por %p104, %p105
      %s107 = ssub.s32 %s10, %s17
      %p108 = scmp.eq.s32.totalorder %s107, 0
      %s110 = sadd.s32 %s109, 1
      %s111 = scalar_select %p108, %s109, %s110
      %p114 = pneg %p108
      %p115 = scmp.eq.s32.totalorder %s10, 1
      %p116 = por %p114, %p115
      %p117 = scmp.ne.s32.totalorder %s109, %s112
      %p118 = scmp.eq.s32.totalorder %s10, 0
      %p119 = por %p117, %p118
      %p120 = scmp.ne.s32.totalorder %s109, %s112
      %p121 = scmp.eq.s32.totalorder %s15, 1
      %p122 = por %p120, %p121
      %p123 = scmp.ne.s32.totalorder %s112, %s113
      %p124 = scmp.eq.s32.totalorder %s15, 0
      %p125 = por %p123, %p124
      %p126 = scmp.ne.s32.totalorder %s112, %s113
      %p127 = scmp.eq.s32.totalorder %s16, 1
      %p128 = por %p126, %p127
      %p130 = scmp.ne.s32.totalorder %s113, %s129
      %p131 = scmp.eq.s32.totalorder %s16, 0
      %p132 = por %p130, %p131
      %p133 = scmp.le.s32.totalorder 1, %s10
      %p134 = scmp.lt.s32.totalorder %s10, 3
      %p135 = pnand %p133, %p134
      %p136 = pneg %p135
      // Predicated region
      $region9: #{critic_attention.1} parent=5 // pred_check
        _
      $region10: #{critic_attention.1} parent=5 // pred_check_branch
        %138 = sbr.rel (%p135) target = $region12
      $region11: #{critic_attention.1} parent=5 // pred_region
        %s139 = ssub.s32 %s10, 1
        // Predicated region
        $region13: #{critic_attention.1} parent=11 // pred_check
          %p140 = pneg %p57
        $region14: #{critic_attention.1} parent=11 // pred_check_branch
          %142 = sbr.rel (%p140) target = $region16
        $region15: #{critic_attention.1} parent=11 // pred_region
          _
        $region16: #{critic_attention.1} parent=11 // pred_fallthru
          _
        // Predicated region
        $region17: #{critic_attention.1} parent=11 // pred_check
          %p143 = pneg %p78
        $region18: #{critic_attention.1} parent=11 // pred_check_branch
          %145 = sbr.rel (%p143) target = $region20
        $region19: #{critic_attention.1} parent=11 // pred_region
          _
        $region20: #{critic_attention.1} parent=11 // pred_fallthru
          _
        // Predicated region
        $region21: #{critic_attention.1} parent=11 // pred_check
          %p146 = pneg %p99
        $region22: #{critic_attention.1} parent=11 // pred_check_branch
          %148 = sbr.rel (%p146) target = $region24
        $region23: #{critic_attention.1} parent=11 // pred_region
          _
        $region24: #{critic_attention.1} parent=11 // pred_fallthru
          _
      $region12: #{critic_attention.1} parent=5 // pred_fallthru
        _
      %p149 = scmp.lt.s32.totalorder %s10, 2
      // Predicated region
      $region25: #{critic_attention.1} parent=5 // pred_check
        %p150 = pneg %p149
      $region26: #{critic_attention.1} parent=5 // pred_check_branch
        %152 = sbr.rel (%p150) target = $region28
      $region27: #{critic_attention.1} parent=5 // pred_region
        // Predicated region
        $region29: #{critic_attention.1} parent=27 // pred_check
          %p153 = pneg %p30
        $region30: #{critic_attention.1} parent=27 // pred_check_branch
          %155 = sbr.rel (%p153) target = $region32
        $region31: #{critic_attention.1} parent=27 // pred_region
          %s156 = sand.u32 %s20, 1
          %s157 = sand.u32 %s20, 1
          %s158 = smul.addr %s157, 32
          %s159 = scalar_lea.vmem [#allocation2], %s158
          %s160 = smul.addr %s10, 8
          %s161 = scalar_lea.vmem %s0, %s160
          // Predicated region
          $region33: #{critic_attention.1} parent=31 // pred_check
            _
          $region34: #{critic_attention.1} parent=31 // pred_check_branch
            %163 = sbr.rel (0) target = $region36
          $region35: #{critic_attention.1} parent=31 // pred_region
            // Predicated region
            $region37: #{critic_attention.1} parent=35 // pred_check
              _
            $region38: #{critic_attention.1} parent=35 // pred_check_branch
              %165 = sbr.rel (0) target = $region40
            $region39: #{critic_attention.1} parent=35 // pred_region
              // Predicated region
              $region52: #{critic_attention.1} parent=39 // pred_check
                _
              $region53: #{critic_attention.1} parent=39 // pred_check_branch
                %187 = sbr.rel (0) target = $region55
              $region54: #{critic_attention.1} parent=39 // pred_region
                loop: start=0, step=1, limit=1
                $region56: #{critic_attention.1} parent=54 // loop_pre_header
                  _
                $region57: #{critic_attention.1} parent=54 // loop_header
                  %s189 = sphi 0, %s193
                  %p190 = scmp.ge.s32.totalorder %s189, 1
                  %s194 = sphi %s161, %s161
                  %s195 = sphi %s159, %s159
                $region58: #{critic_attention.1} parent=54 // loop_header_branch
                  %192 = sbr.rel (%p190) target = $region62
                $region59: #{critic_attention.1} parent=54 // loop_body
                  %v196 = vld [vmem:[%s194] sm:$0xff]
                  %197 = vst [vmem:[%s195] sm:$0xff] %v196
                  %v198 = vld [vmem:[%s194 + $0x10] sm:$0xff]
                  %199 = vst [vmem:[%s195 + $0x8] sm:$0xff] %v198
                  %v200 = vld [vmem:[%s194 + $0x20] sm:$0xff]
                  %201 = vst [vmem:[%s195 + $0x10] sm:$0xff] %v200
                  %v202 = vld [vmem:[%s194 + $0x30] sm:$0xff]
                  %203 = vst [vmem:[%s195 + $0x18] sm:$0xff] %v202
                $region60: #{critic_attention.1} parent=54 // loop_footer
                  %s193 = sadd.s32 1, %s189
                $region61: #{critic_attention.1} parent=54 // loop_footer_branch
                  %188 = sbr.rel target = $region57
                $region62: #{critic_attention.1} parent=54 // loop_exit
                  _
              $region55: #{critic_attention.1} parent=39 // pred_fallthru
                _
              // Predicated region
              $region63: #{critic_attention.1} parent=39 // pred_check
                _
              $region64: #{critic_attention.1} parent=39 // pred_check_branch
                %205 = sbr.rel target = $region66
              $region65: #{critic_attention.1} parent=39 // pred_region
                _
              $region66: #{critic_attention.1} parent=39 // pred_fallthru
                _
            $region40: #{critic_attention.1} parent=35 // pred_fallthru
              _
            // Predicated region
            $region41: #{critic_attention.1} parent=35 // pred_check
              _
            $region42: #{critic_attention.1} parent=35 // pred_check_branch
              %167 = sbr.rel target = $region44
            $region43: #{critic_attention.1} parent=35 // pred_region
              %s169 = ssub.s32 256, 1
              loop: start=0, step=1, limit=1
              $region45: #{critic_attention.1} parent=43 // loop_pre_header
                _
              $region46: #{critic_attention.1} parent=43 // loop_header
                %s171 = sphi 0, %s175
                %p172 = scmp.ge.s32.totalorder %s171, 1
                %s176 = sphi %s161, %s161
                %s177 = sphi %s159, %s159
              $region47: #{critic_attention.1} parent=43 // loop_header_branch
                %174 = sbr.rel (%p172) target = $region51
              $region48: #{critic_attention.1} parent=43 // loop_body
                %v178 = vld [vmem:[%s176] sm:%s169]
                %179 = vst [vmem:[%s177] sm:%s169] %v178
                %v180 = vld [vmem:[%s176 + $0x10] sm:%s169]
                %181 = vst [vmem:[%s177 + $0x8] sm:%s169] %v180
                %v182 = vld [vmem:[%s176 + $0x20] sm:%s169]
                %183 = vst [vmem:[%s177 + $0x10] sm:%s169] %v182
                %v184 = vld [vmem:[%s176 + $0x30] sm:%s169]
                %185 = vst [vmem:[%s177 + $0x18] sm:%s169] %v184
              $region49: #{critic_attention.1} parent=43 // loop_footer
                %s175 = sadd.s32 1, %s171
              $region50: #{critic_attention.1} parent=43 // loop_footer_branch
                %170 = sbr.rel target = $region46
              $region51: #{critic_attention.1} parent=43 // loop_exit
                _
            $region44: #{critic_attention.1} parent=35 // pred_fallthru
              _
          $region36: #{critic_attention.1} parent=31 // pred_fallthru
            _
          %206 = vnop
        $region32: #{critic_attention.1} parent=27 // pred_fallthru
          _
      $region28: #{critic_attention.1} parent=5 // pred_fallthru
        _
      %p207 = scmp.le.s32.totalorder 1, %s10
      %p208 = scmp.lt.s32.totalorder %s10, 3
      %p209 = pnand %p207, %p208
      %p210 = pneg %p209
      // Predicated region
      $region67: #{critic_attention.1} parent=5 // pred_check
        _
      $region68: #{critic_attention.1} parent=5 // pred_check_branch
        %212 = sbr.rel (%p209) target = $region70
      $region69: #{critic_attention.1} parent=5 // pred_region
        %s213 = ssub.s32 %s10, 1
        %s214 = sand.u32 %s23, 1
        %s215 = sand.u32 %s23, 1
        %s216 = smul.addr %s215, 32
        %s217 = scalar_lea.vmem [#allocation2], %s216
        // Predicated region
        $region71: #{critic_attention.1} parent=69 // pred_check
          %p218 = pneg %p36
        $region72: #{critic_attention.1} parent=69 // pred_check_branch
          %220 = sbr.rel (%p218) target = $region74
        $region73: #{critic_attention.1} parent=69 // pred_region
          _
        $region74: #{critic_attention.1} parent=69 // pred_fallthru
          _
        %s221 = sand.u32 %s23, 1
        %s222 = sand.u32 %s23, 1
        %s223 = smul.addr %s222, 32
        %s224 = scalar_lea.vmem [#allocation2], %s223
        %p225 = pneg %p36
        %p226 = pneg %p33
        %p227 = pneg %p57
        %p228 = pneg %p54
        %p229 = pneg %p78
        %p230 = pneg %p75
        %p231 = pneg %p99
        %p232 = pneg %p96
        %p233 = pneg %p125
        %p234 = pneg %p122
        %p235 = scmp.lt.s32.totalorder %s15, 1
        %s236 = scalar_select %p235, %s15, 1
        %s237 = scalar_lea.vmem %s4, %s236
        %p238 = scmp.lt.s32.totalorder %s15, 1
        %s239 = scalar_select %p238, %s15, 1
        %s240 = scalar_lea.vmem %s4, %s239
        %v241 = vld [vmem:[%s2] sm:$0xff]
        %v242 = vld [vmem:[%s2 + $0x8] sm:$0xff]
        %v243 = vld [vmem:[%s2 + $0x10] sm:$0xff]
        %v244 = vld [vmem:[%s2 + $0x18] sm:$0xff]
        %v245 = vld [vmem:[%s217] sm:$0xff]
        %v246 = vld [vmem:[%s217 + $0x8] sm:$0xff]
        %v247 = vld [vmem:[%s217 + $0x10] sm:$0xff]
        %v248 = vld [vmem:[%s217 + $0x18] sm:$0xff]
        %v249 = vlaneseq
        %v250 = vand.u32 %v249, 127
        %s251 = smul.u32 %s15, 128
        %v252 = vstv %s251
        %v253 = vadd.s32 %v250, %v252
        %v254 = vlaneseq
        %v255 = vshrl.u32 %v254, 7
        %v256 = vadd.s32 %v255, 8
        %v257 = vmul.u32 %v255, 16
        %v258 = vmul.u32 %v256, 16
        %vm259 = vcmp.ge.s32.totalorder %v253, %v257
        %vm260 = vcmp.ge.s32.totalorder %v253, %v258
        %v261 = vadd.s32 %v255, 1
        %v262 = vadd.s32 %v256, 1
        %v263 = vmul.u32 %v261, 16
        %v264 = vmul.u32 %v262, 16
        %vm265 = vcmp.lt.s32.totalorder %v253, %v263
        %vm266 = vcmp.lt.s32.totalorder %v253, %v264
        %vm267 = vmand %vm259, %vm265
        %vm268 = vmand %vm260, %vm266
        %v269 = vsel %vm267, 1, 0
        %v270 = vsel %vm268, 1, 0
        %v271 = vcvt.s32.f32 %v269
        %v272 = vcvt.s32.f32 %v270
        %v273 = vld [vmem:[%s1] sm:$0xff]
        %v274 = vld [vmem:[%s1 + $0x8] sm:$0xff]
        %v275 = vld [vmem:[%s1 + $0x10] sm:$0xff]
        %v276 = vld [vmem:[%s1 + $0x18] sm:$0xff]
        %vm277 = vcmask 130048
        %v279 = vsel %vm277, %v273, 0
        %v282 = vsel %vm277, %v274, 0
        %v285 = vsel %vm277, %v275, 0
        %v288 = vsel %vm277, %v276, 0
        %290 = vmatpush.msra.mxu0 0.0
        %291 = vmatpush.msra.mxu0 0.0
        %292 = vmatpush.msra.mxu0 0.0
        %293 = vmatpush.msra.mxu0 0.0
        %294 = vmatpush.msra.mxu0 0.0
        %295 = vmatpush.msra.mxu0 0.0
        %296 = vmatpush.msra.mxu0 0.0
        %297 = vmatpush.msra.mxu0 0.0
        %298 = vmatpush.msra.mxu0 0.0
        %299 = vmatpush.msra.mxu0 0.0
        %300 = vmatpush.msra.mxu0 0.0
        %301 = vmatpush.msra.mxu0 0.0
        %302 = vmatpush.msra.mxu0 0.0
        %303 = vmatpush.msra.mxu0 0.0
        %304 = vmatpush.msra.mxu0 %v272
        %305 = vmatpush.msra.mxu0 %v271
        %306 = vmatmul.f32.gmra.mxu0 %v279
        %v307 = vpop.f32.mrf.mxu0
        %v308 = vadd.f32 0.0, %v307
        %309 = vmatmul.f32.gmra.mxu0 %v282
        %v310 = vpop.f32.mrf.mxu0
        %v311 = vadd.f32 0.0, %v310
        %312 = vmatmul.f32.gmra.mxu0 %v285
        %v313 = vpop.f32.mrf.mxu0
        %v314 = vadd.f32 0.0, %v313
        %315 = vmatmul.f32.gmra.mxu0 %v288
        %v316 = vpop.f32.mrf.mxu0
        %v317 = vadd.f32 0.0, %v316
        %318 = vdwg.mxu0
        %vm319 = vcmask 261120
        %v321 = vsel %vm319, %v241, 0
        %v324 = vsel %vm319, %v242, 0
        %v327 = vsel %vm319, %v243, 0
        %v330 = vsel %vm319, %v244, 0
        %332 = vmatpush.msra.mxu0 0.0
        %333 = vmatpush.msra.mxu0 0.0
        %334 = vmatpush.msra.mxu0 0.0
        %335 = vmatpush.msra.mxu0 0.0
        %336 = vmatpush.msra.mxu0 0.0
        %337 = vmatpush.msra.mxu0 0.0
        %338 = vmatpush.msra.mxu0 0.0
        %339 = vmatpush.msra.mxu0 0.0
        %340 = vmatpush.msra.mxu0 0.0
        %341 = vmatpush.msra.mxu0 0.0
        %342 = vmatpush.msra.mxu0 0.0
        %343 = vmatpush.msra.mxu0 0.0
        %344 = vmatpush.msra.mxu0 %v248
        %345 = vmatpush.msra.mxu0 %v247
        %346 = vmatpush.msra.mxu0 %v246
        %347 = vmatpush.msra.mxu0 %v245
        %348 = vmatmul.f32.gmra.mxu0 %v321
        %v349 = vpop.f32.mrf.mxu0
        %v350 = vadd.f32 %v308, %v349
        %351 = vmatmul.f32.gmra.mxu0 %v324
        %v352 = vpop.f32.mrf.mxu0
        %v353 = vadd.f32 %v311, %v352
        %354 = vmatmul.f32.gmra.mxu0 %v327
        %v355 = vpop.f32.mrf.mxu0
        %v356 = vadd.f32 %v314, %v355
        %357 = vmatmul.f32.gmra.mxu0 %v330
        %v358 = vpop.f32.mrf.mxu0
        %v359 = vadd.f32 %v317, %v358
        %360 = vdwg.mxu0
        %v361 = vtanh.pop %v350
        %v362 = vtanh.pop %v353
        %v363 = vtanh.pop %v356
        %v364 = vtanh.pop %v359
        %v365 = vld [vmem:[%s3] sm:$0xff]
        %v366 = vld [vmem:[%s3 + $0x8] sm:$0xff]
        %v367 = vld [vmem:[%s3 + $0x10] sm:$0xff]
        %v368 = vld [vmem:[%s3 + $0x18] sm:$0xff]
        %370 = vset.pattern.permute.xlu0 0
        %371 = vperm.xlu0 %370, %v365
        %v372 = vpop.permute.xlu0 %371
        %375 = vset.pattern.permute.xlu0 0
        %376 = vperm.xlu0 %375, %v366
        %v377 = vpop.permute.xlu0 %376
        %380 = vset.pattern.permute.xlu0 0
        %381 = vperm.xlu0 %380, %v367
        %v382 = vpop.permute.xlu0 %381
        %385 = vset.pattern.permute.xlu0 0
        %386 = vperm.xlu0 %385, %v368
        %v387 = vpop.permute.xlu0 %386
        %v389 = vmul.f32 %v361, %v372
        %v390 = vmul.f32 %v362, %v377
        %v391 = vmul.f32 %v363, %v382
        %v392 = vmul.f32 %v364, %v387
        %v393 = vadd.f32 %v389, %v390
        %v394 = vadd.f32 %v393, %v391
        %v395 = vadd.f32 %v394, %v392
        %v396 = vrot.slane %v395, 4
        %v397 = vadd.f32 %v395, %v396
        %v398 = vrot.slane %v397, 2
        %v399 = vadd.f32 %v397, %v398
        %v400 = vrot.slane %v399, 1
        %v401 = vadd.f32 %v399, %v400
        %vm402 = vcmp.ge.s32.totalorder %v250, %v257
        %vm403 = vcmp.lt.s32.totalorder %v250, %v263
        %vm404 = vmand %vm402, %vm403
        %v405 = vsel %vm404, 1, 0
        %v406 = vcvt.s32.f32 %v405
        %v407 = vsel %vm404, %v401, -inf
        %408 = vmax.xlane.f32.xlu0 %v407
        %v409 = vpop.xlane.xlu0 %408
        %v410 = vmul.f32 %v406, %v409
        %v411 = vrot.slane %v410, 4
        %v412 = vadd.f32 %v410, %v411
        %v413 = vrot.slane %v412, 2
        %v414 = vadd.f32 %v412, %v413
        %v415 = vrot.slane %v414, 1
        %v416 = vadd.f32 %v414, %v415
        %v417 = vsub.f32 %v401, %v416
        %v418 = vmul.f32 %v417, 1.442695
        %v419 = vpow.pop %v418
        %v420 = vmul.f32 %v406, %v419
        %421 = vadd.xlane.f32.xlu0 %v420
        %v422 = vpop.xlane.xlu0 %421
        %v423 = vmul.f32 %v406, %v422
        %v424 = vrot.slane %v423, 4
        %v425 = vadd.f32 %v423, %v424
        %v426 = vrot.slane %v425, 2
        %v427 = vadd.f32 %v425, %v426
        %v428 = vrot.slane %v427, 1
        %v429 = vadd.f32 %v427, %v428
        %v430 = vrcp.pop %v429
        %v431 = vmul.f32 %v429, %v430
        %v432 = vsub.f32 2.0, %v431
        %v433 = vmul.f32 %v430, %v432
        %v434 = vmul.f32 %v419, %v433
        %435 = vst [vmem:[%s240] sm:$0x1] %v434
        %p436 = scmp.lt.s32.totalorder %s15, 1
        %s437 = scalar_select %p436, %s15, 1
        %s438 = scalar_lea.vmem %s4, %s437
        // Predicated region
        $region75: #{critic_attention.1} parent=69 // pred_check
          %p439 = pneg %p122
        $region76: #{critic_attention.1} parent=69 // pred_check_branch
          %441 = sbr.rel (%p439) target = $region78
        $region77: #{critic_attention.1} parent=69 // pred_region
          _
        $region78: #{critic_attention.1} parent=69 // pred_fallthru
          _
      $region70: #{critic_attention.1} parent=5 // pred_fallthru
        _
      %p442 = scmp.le.s32.totalorder 2, %s10
      // Predicated region
      $region79: #{critic_attention.1} parent=5 // pred_check
        %p443 = pneg %p442
      $region80: #{critic_attention.1} parent=5 // pred_check_branch
        %445 = sbr.rel (%p443) target = $region82
      $region81: #{critic_attention.1} parent=5 // pred_region
        %s446 = ssub.s32 %s10, 2
        // Predicated region
        $region83: #{critic_attention.1} parent=81 // pred_check
          %p447 = pneg %p128
        $region84: #{critic_attention.1} parent=81 // pred_check_branch
          %449 = sbr.rel (%p447) target = $region86
        $region85: #{critic_attention.1} parent=81 // pred_region
          %p450 = scmp.lt.s32.totalorder %s16, 1
          %s451 = scalar_select %p450, %s16, 1
          %s452 = scalar_lea.vmem %s4, %s451
        $region86: #{critic_attention.1} parent=81 // pred_fallthru
          _
      $region82: #{critic_attention.1} parent=5 // pred_fallthru
        _
    $region6: #{critic_attention.1} parent=1 // loop_footer
      %s14 = sadd.s32 1, %s10
    $region7: #{critic_attention.1} parent=1 // loop_footer_branch
      %9 = sbr.rel target = $region3
    $region8: #{critic_attention.1} parent=1 // loop_exit
      _

</llo_original>
